<compile_context>
chip_gen: v7x
topology: tpu7x:2x2x1
jax: 0.10.0
libtpu: 0.0.40
codegen_flags: <defaults>
</compile_context>

<pallas_src>
import functools

import jax
import jax.numpy as jnp
from jax.experimental import pallas as pl
from jax.experimental.pallas import tpu as pltpu


def _graphsage_kernel(*refs, num_neighbors):
    # refs = (x_0, ..., x_{K-1}, a0, ak, b, out)
    #   x_k : [tile_n, F]   neighbor features (x_0 is the "self" h)
    #   a0  : [F, O]        Wh + Wm / K   (mean scale folded in)
    #   ak  : [F, O]        Wm / K
    #   b   : [1, O]
    #   out : [tile_n, O]
    x_refs = refs[:num_neighbors]
    a0_ref, ak_ref, b_ref, o_ref = refs[num_neighbors:]

    # Fused mean + concat + linear as pure MXU accumulation.
    z = jnp.dot(x_refs[0][...], a0_ref[...], preferred_element_type=jnp.float32)
    for xr in x_refs[1:]:  # K is small & static -> unrolled at trace time
        z = z + jnp.dot(xr[...], ak_ref[...], preferred_element_type=jnp.float32)
    z = z + b_ref[...]

    # softmax over the last dim (matches F.softmax on a 2-D tensor, dim=1).
    # Epilogue stays in f32 (v5e VPU/EUP have no bf16 path).
    m = jnp.max(z, axis=-1, keepdims=True)
    e = jnp.exp(z - m)
    s = e * pl.reciprocal(jnp.sum(e, axis=-1, keepdims=True), approx=True)

    # Post-softmax ReLU of the PyTorch module is a no-op (softmax >= 0) -> elided.
    o_ref[...] = s.astype(o_ref.dtype)


def graphsage_agg(x_list, weight, bias, *, tile_n=None, mxu_dtype=None):
    """GraphSageAgg forward.

    x_list : list of K arrays [N, F]
    weight : [O, 2F]  (nn.Linear weight)
    bias   : [O]
    tile_n : node-tile size (auto-sized for VMEM if None)
    mxu_dtype : optional narrower dtype (e.g. jnp.bfloat16) for MXU operands
                on v6e/v7x; softmax epilogue stays f32 regardless.
    """
    k = len(x_list)
    n, f = x_list[0].shape
    out_f = weight.shape[0]

    # Fold the 1/K mean scale into the weights; split concat into two blocks.
    w_h = weight[:, :f].T.astype(jnp.float32)      # [F, O]
    w_m = weight[:, f:].T.astype(jnp.float32)      # [F, O]
    ak = w_m / k
    a0 = w_h + ak
    b2d = bias.reshape(1, out_f).astype(jnp.float32)

    if mxu_dtype is not None:
        x_list = [x.astype(mxu_dtype) for x in x_list]
        a0 = a0.astype(mxu_dtype)
        ak = ak.astype(mxu_dtype)

    x_dtype = x_list[0].dtype
    itemsize = jnp.dtype(x_dtype).itemsize

    # Tile size: biggest node tile that fits a conservative VMEM budget
    # (double-buffered inputs + output), sized to be safe on v7x (64 MiB VMEM).
    if tile_n is None:
        bytes_per_row = k * f * itemsize + out_f * 4        # K input rows + 1 output row
        budget = 8 * 1024 * 1024                            # per double-buffered set
        tile_n = max(8, min(n, budget // (2 * bytes_per_row)))
        tile_n = min(tile_n, 1024)
        if tile_n < n:
            tile_n = max(8, (tile_n // 8) * 8)               # sublane alignment
    tile_n = min(tile_n, n)

    grid = (pl.cdiv(n, tile_n),)

    x_spec = pl.BlockSpec((tile_n, f), lambda i: (i, 0))
    w_spec = pl.BlockSpec((f, out_f), lambda i: (0, 0))      # VMEM-resident across grid
    b_spec = pl.BlockSpec((1, out_f), lambda i: (0, 0))

    kernel = functools.partial(_graphsage_kernel, num_neighbors=k)

    return pl.pallas_call(
        kernel,
        out_shape=jax.ShapeDtypeStruct((n, out_f), jnp.float32),
        grid=grid,
        in_specs=[x_spec] * k + [w_spec, w_spec, b_spec],
        out_specs=pl.BlockSpec((tile_n, out_f), lambda i: (i, 0)),
        compiler_params=pltpu.CompilerParams(
            dimension_semantics=("parallel",),               # megacore on v7x
            vmem_limit_bytes=32 * 1024 * 1024,               # explicit, safe on all gens
        ),
    )(*x_list, a0, ak, b2d)


def _reference(x_list, weight, bias):
    h = x_list[0]
    y = jnp.mean(jnp.stack(x_list, axis=0), axis=0)
    z = jnp.concatenate([h, y], axis=-1) @ weight.T + bias
    s = jax.nn.softmax(z, axis=-1)
    return jnp.maximum(s, 0.0)


if __name__ == "__main__":
    # Small deterministic setup consistent with the module:
    #   K = 3 neighbor tensors, N = 256 nodes, in_feature = 32, out_feature = 16.
    # tile_n=64 forces a 4-step pipelined grid to exercise the gridded path.
    K, N, IN_F, OUT_F = 3, 256, 32, 16

    key = jax.random.PRNGKey(0)
    k_x, k_w, k_b = jax.random.split(key, 3)

    x_list = [
        jax.random.normal(jax.random.fold_in(k_x, i), (N, IN_F), dtype=jnp.float32)
        for i in range(K)
    ]

    # nn.Linear(in_feature*2, out_feature) init: uniform(-bound, bound)
    bound = 1.0 / jnp.sqrt(2.0 * IN_F)
    weight = jax.random.uniform(k_w, (OUT_F, 2 * IN_F), jnp.float32, -bound, bound)
    bias = jax.random.uniform(k_b, (OUT_F,), jnp.float32, -bound, bound)

    out = graphsage_agg(x_list, weight, bias, tile_n=64)
    out = jax.block_until_ready(out)

    ref = _reference(x_list, weight, bias)
    assert out.shape == (N, OUT_F)
    # Tolerance relaxed from 1e-5 to 1e-3: approx (EUP) reciprocal in the
    # softmax denominator and the folded-mean weight algebra change rounding.
    assert jnp.allclose(out, ref, atol=1e-3, rtol=1e-3), float(
        jnp.max(jnp.abs(out - ref))
    )

    print("KERNEL_OK")
</pallas_src>

<mosaic_0001>
module attributes {stable_mosaic.version = 11 : i64} {
  func.func @_graphsage_kernel(%arg0: i32, %arg1: memref<64x32xf32, #tpu.memory_space<vmem>>, %arg2: memref<64x32xf32, #tpu.memory_space<vmem>>, %arg3: memref<64x32xf32, #tpu.memory_space<vmem>>, %arg4: memref<32x16xf32, #tpu.memory_space<vmem>>, %arg5: memref<32x16xf32, #tpu.memory_space<vmem>>, %arg6: memref<1x16xf32, #tpu.memory_space<vmem>>, %arg7: memref<64x16xf32, #tpu.memory_space<vmem>>) attributes {dimension_semantics = [#tpu.dimension_semantics<parallel>], iteration_bounds = array<i64: 4>, scalar_prefetch = 0 : i64, scratch_operands = 0 : i64, tpu.core_type = #tpu.core_type<tc>, window_params = [{transform_indices = @transform_0, window_bounds = array<i64: 64, 32>}, {transform_indices = @transform_1, window_bounds = array<i64: 64, 32>}, {transform_indices = @transform_2, window_bounds = array<i64: 64, 32>}, {pipeline_mode = #tpu.pipeline_mode<synchronous>, transform_indices = @transform_3, window_bounds = array<i64: 32, 16>}, {pipeline_mode = #tpu.pipeline_mode<synchronous>, transform_indices = @transform_4, window_bounds = array<i64: 32, 16>}, {pipeline_mode = #tpu.pipeline_mode<synchronous>, transform_indices = @transform_5, window_bounds = array<i64: 1, 16>}, {transform_indices = @transform_6, window_bounds = array<i64: 64, 16>}]} {
    %c0 = arith.constant 0 : index
    %c0_0 = arith.constant 0 : index
    %0 = vector.load %arg1[%c0, %c0_0] : memref<64x32xf32, #tpu.memory_space<vmem>>, vector<64x32xf32>
    %c0_1 = arith.constant 0 : index
    %c0_2 = arith.constant 0 : index
    %1 = vector.load %arg4[%c0_1, %c0_2] : memref<32x16xf32, #tpu.memory_space<vmem>>, vector<32x16xf32>
    %cst = arith.constant dense<0.000000e+00> : vector<64x16xf32>
    %2 = tpu.matmul %0, %1, %cst {dimension_numbers = #tpu.dot_dimension_numbers<[1], [0], [0], [1], [0, 0, 1, 1], [], []>} : vector<64x32xf32>, vector<32x16xf32>, vector<64x16xf32> -> vector<64x16xf32>
    %c0_3 = arith.constant 0 : index
    %c0_4 = arith.constant 0 : index
    %3 = vector.load %arg2[%c0_3, %c0_4] : memref<64x32xf32, #tpu.memory_space<vmem>>, vector<64x32xf32>
    %c0_5 = arith.constant 0 : index
    %c0_6 = arith.constant 0 : index
    %4 = vector.load %arg5[%c0_5, %c0_6] : memref<32x16xf32, #tpu.memory_space<vmem>>, vector<32x16xf32>
    %cst_7 = arith.constant dense<0.000000e+00> : vector<64x16xf32>
    %5 = tpu.matmul %3, %4, %cst_7 {dimension_numbers = #tpu.dot_dimension_numbers<[1], [0], [0], [1], [0, 0, 1, 1], [], []>} : vector<64x32xf32>, vector<32x16xf32>, vector<64x16xf32> -> vector<64x16xf32>
    %6 = arith.addf %2, %5 : vector<64x16xf32>
    %c0_8 = arith.constant 0 : index
    %c0_9 = arith.constant 0 : index
    %7 = vector.load %arg3[%c0_8, %c0_9] : memref<64x32xf32, #tpu.memory_space<vmem>>, vector<64x32xf32>
    %c0_10 = arith.constant 0 : index
    %c0_11 = arith.constant 0 : index
    %8 = vector.load %arg5[%c0_10, %c0_11] : memref<32x16xf32, #tpu.memory_space<vmem>>, vector<32x16xf32>
    %cst_12 = arith.constant dense<0.000000e+00> : vector<64x16xf32>
    %9 = tpu.matmul %7, %8, %cst_12 {dimension_numbers = #tpu.dot_dimension_numbers<[1], [0], [0], [1], [0, 0, 1, 1], [], []>} : vector<64x32xf32>, vector<32x16xf32>, vector<64x16xf32> -> vector<64x16xf32>
    %10 = arith.addf %6, %9 : vector<64x16xf32>
    %c0_13 = arith.constant 0 : index
    %c0_14 = arith.constant 0 : index
    %11 = vector.load %arg6[%c0_13, %c0_14] : memref<1x16xf32, #tpu.memory_space<vmem>>, vector<1x16xf32>
    %12 = vector.broadcast %11 : vector<1x16xf32> to vector<64x16xf32>
    %13 = arith.addf %10, %12 : vector<64x16xf32>
    %cst_15 = arith.constant dense<0xFF800000> : vector<64xf32>
    %14 = vector.multi_reduction <maximumf>, %13, %cst_15 [1] : vector<64x16xf32> to vector<64xf32>
    %15 = vector.shape_cast %14 : vector<64xf32> to vector<64x1xf32>
    %16 = vector.broadcast %15 : vector<64x1xf32> to vector<64x16xf32>
    %17 = arith.subf %13, %16 : vector<64x16xf32>
    %18 = math.exp %17 : vector<64x16xf32>
    %cst_16 = arith.constant dense<0.000000e+00> : vector<64xf32>
    %19 = vector.multi_reduction <add>, %18, %cst_16 [1] : vector<64x16xf32> to vector<64xf32>
    %20 = vector.shape_cast %19 : vector<64xf32> to vector<64x1xf32>
    %21 = tpu.reciprocal %20 {approx = true} : vector<64x1xf32> -> vector<64x1xf32>
    %22 = vector.broadcast %21 : vector<64x1xf32> to vector<64x16xf32>
    %23 = arith.mulf %18, %22 : vector<64x16xf32>
    %c0_17 = arith.constant 0 : index
    %c0_18 = arith.constant 0 : index
    %24 = vector.load %arg7[%c0_17, %c0_18] : memref<64x16xf32, #tpu.memory_space<vmem>>, vector<64x16xf32>
    tpu.vector_store %arg7[%c0_17, %c0_18], %23 {strides = array<i32>} : memref<64x16xf32, #tpu.memory_space<vmem>>, vector<64x16xf32>,
    return
  }
  func.func @transform_0(%arg0: i32) -> (i32, i32) {
    %c0_i32 = arith.constant 0 : i32
    %c0_i32_0 = arith.constant 0 : i32
    return %arg0, %c0_i32 : i32, i32
  }
  func.func @transform_1(%arg0: i32) -> (i32, i32) {
    %c0_i32 = arith.constant 0 : i32
    %c0_i32_0 = arith.constant 0 : i32
    return %arg0, %c0_i32 : i32, i32
  }
  func.func @transform_2(%arg0: i32) -> (i32, i32) {
    %c0_i32 = arith.constant 0 : i32
    %c0_i32_0 = arith.constant 0 : i32
    return %arg0, %c0_i32 : i32, i32
  }
  func.func @transform_3(%arg0: i32) -> (i32, i32) {
    %c0_i32 = arith.constant 0 : i32
    %c0_i32_0 = arith.constant 0 : i32
    %c0_i32_1 = arith.constant 0 : i32
    return %c0_i32, %c0_i32_0 : i32, i32
  }
  func.func @transform_4(%arg0: i32) -> (i32, i32) {
    %c0_i32 = arith.constant 0 : i32
    %c0_i32_0 = arith.constant 0 : i32
    %c0_i32_1 = arith.constant 0 : i32
    return %c0_i32, %c0_i32_0 : i32, i32
  }
  func.func @transform_5(%arg0: i32) -> (i32, i32) {
    %c0_i32 = arith.constant 0 : i32
    %c0_i32_0 = arith.constant 0 : i32
    %c0_i32_1 = arith.constant 0 : i32
    return %c0_i32, %c0_i32_0 : i32, i32
  }
  func.func @transform_6(%arg0: i32) -> (i32, i32) {
    %c0_i32 = arith.constant 0 : i32
    %c0_i32_0 = arith.constant 0 : i32
    return %arg0, %c0_i32 : i32, i32
  }
}

</mosaic_0001>

<llo_original>
// kernel: tpu_custom_call.1
$region0: #{tpu_custom_call.1}
  #allocation0 [shape = 'u32[]', space=smem, size = 0x4, offset = 0x4, fixed_abs, tag = 'smem constant byte address 0x4 - core index']
  #allocation1 [shape = 'u32[144,128]{1,0:T(1,128)}', space=vmem, size = 0x12000, scoped, tag = 'internal scratch']
  %s0 = inlined_call_operand.vmem [shape: f32[256,32], index: 0, kind: input, shape index: {}]
  %s1 = inlined_call_operand.vmem [shape: f32[256,32], index: 1, kind: input, shape index: {}]
  %s2 = inlined_call_operand.vmem [shape: f32[256,32], index: 2, kind: input, shape index: {}]
  %s3 = inlined_call_operand.vmem [shape: f32[32,16], index: 3, kind: input, shape index: {}]
  %s4 = inlined_call_operand.vmem [shape: f32[32,16], index: 4, kind: input, shape index: {}]
  %s5 = inlined_call_operand.vmem [shape: f32[1,16], index: 5, kind: input, shape index: {}]
  %s6 = inlined_call_operand.vmem [shape: f32[256,16], index: 6, kind: output, shape index: {}]
  %s7 = sld [smem:[#allocation0]]
  $region57: #{tpu_custom_call.1} parent=0
    _
  %s9 = ssub.s32 1, %s7
  %s10 = scalar_select 0, %s9, %s7
  loop: start=0, step=1, limit=6
  $region2: #{tpu_custom_call.1} parent=0 // loop_pre_header
    _
  $region3: #{tpu_custom_call.1} parent=0 // loop_header
    %s12 = sphi 0, %s16
    %p13 = scmp.ge.s32.totalorder %s12, 6
    %s22 = sphi 0, %s24
    %s25 = sphi 0, %s22
    %s26 = sphi 0, %s25
    %s42 = sphi 0, %s26
    %s48 = sphi 0, %s50
    %s51 = sphi 0, %s48
    %s52 = sphi 0, %s51
    %s68 = sphi 0, %s52
    %s74 = sphi 0, %s76
    %s77 = sphi 0, %s74
    %s78 = sphi 0, %s77
    %s94 = sphi 0, %s78
    %s98 = sphi 0, %s98
    %s100 = sphi 0, %s98
    %s101 = sphi 0, %s100
    %s115 = sphi 0, %s101
    %s119 = sphi 0, %s119
    %s121 = sphi 0, %s119
    %s122 = sphi 0, %s121
    %s136 = sphi 0, %s122
    %s140 = sphi 0, %s140
    %s142 = sphi 0, %s140
    %s143 = sphi 0, %s142
    %s157 = sphi 0, %s143
    %s163 = sphi 0, %s165
    %s166 = sphi 0, %s163
    %s167 = sphi 0, %s166
    %s183 = sphi 0, %s167
  $region4: #{tpu_custom_call.1} parent=0 // loop_header_branch
    %15 = sbr.rel (%p13) target = $region8
  $region5: #{tpu_custom_call.1} parent=0 // loop_body
    %s17 = ssub.s32 %s12, 1
    %s18 = ssub.s32 %s12, 2
    %s19 = sadd.s32 %s12, 1
    %s20 = ssub.s32 %s12, %s19
    %p21 = scmp.eq.s32.totalorder %s20, 0
    %s23 = sadd.s32 %s22, 1
    %s24 = scalar_select %p21, %s22, %s23
    %p27 = pneg %p21
    %p28 = scmp.eq.s32.totalorder %s12, 3
    %p29 = por %p27, %p28
    %p30 = scmp.ne.s32.totalorder %s22, %s25
    %p31 = scmp.eq.s32.totalorder %s12, 0
    %p32 = por %p30, %p31
    %p33 = scmp.ne.s32.totalorder %s22, %s25
    %p34 = scmp.eq.s32.totalorder %s17, 3
    %p35 = por %p33, %p34
    %p36 = scmp.ne.s32.totalorder %s25, %s26
    %p37 = scmp.eq.s32.totalorder %s17, 0
    %p38 = por %p36, %p37
    %p39 = scmp.ne.s32.totalorder %s25, %s26
    %p40 = scmp.eq.s32.totalorder %s18, 3
    %p41 = por %p39, %p40
    %p43 = scmp.ne.s32.totalorder %s26, %s42
    %p44 = scmp.eq.s32.totalorder %s18, 0
    %p45 = por %p43, %p44
    %s46 = ssub.s32 %s12, %s19
    %p47 = scmp.eq.s32.totalorder %s46, 0
    %s49 = sadd.s32 %s48, 1
    %s50 = scalar_select %p47, %s48, %s49
    %p53 = pneg %p47
    %p54 = scmp.eq.s32.totalorder %s12, 3
    %p55 = por %p53, %p54
    %p56 = scmp.ne.s32.totalorder %s48, %s51
    %p57 = scmp.eq.s32.totalorder %s12, 0
    %p58 = por %p56, %p57
    %p59 = scmp.ne.s32.totalorder %s48, %s51
    %p60 = scmp.eq.s32.totalorder %s17, 3
    %p61 = por %p59, %p60
    %p62 = scmp.ne.s32.totalorder %s51, %s52
    %p63 = scmp.eq.s32.totalorder %s17, 0
    %p64 = por %p62, %p63
    %p65 = scmp.ne.s32.totalorder %s51, %s52
    %p66 = scmp.eq.s32.totalorder %s18, 3
    %p67 = por %p65, %p66
    %p69 = scmp.ne.s32.totalorder %s52, %s68
    %p70 = scmp.eq.s32.totalorder %s18, 0
    %p71 = por %p69, %p70
    %s72 = ssub.s32 %s12, %s19
    %p73 = scmp.eq.s32.totalorder %s72, 0
    %s75 = sadd.s32 %s74, 1
    %s76 = scalar_select %p73, %s74, %s75
    %p79 = pneg %p73
    %p80 = scmp.eq.s32.totalorder %s12, 3
    %p81 = por %p79, %p80
    %p82 = scmp.ne.s32.totalorder %s74, %s77
    %p83 = scmp.eq.s32.totalorder %s12, 0
    %p84 = por %p82, %p83
    %p85 = scmp.ne.s32.totalorder %s74, %s77
    %p86 = scmp.eq.s32.totalorder %s17, 3
    %p87 = por %p85, %p86
    %p88 = scmp.ne.s32.totalorder %s77, %s78
    %p89 = scmp.eq.s32.totalorder %s17, 0
    %p90 = por %p88, %p89
    %p91 = scmp.ne.s32.totalorder %s77, %s78
    %p92 = scmp.eq.s32.totalorder %s18, 3
    %p93 = por %p91, %p92
    %p95 = scmp.ne.s32.totalorder %s78, %s94
    %p96 = scmp.eq.s32.totalorder %s18, 0
    %p97 = por %p95, %p96
    %s99 = sadd.s32 %s98, 1
    %p102 = scmp.eq.s32.totalorder %s12, 3
    %p103 = scmp.ne.s32.totalorder %s98, %s100
    %p104 = scmp.eq.s32.totalorder %s12, 0
    %p105 = por %p103, %p104
    %p106 = scmp.ne.s32.totalorder %s98, %s100
    %p107 = scmp.eq.s32.totalorder %s17, 3
    %p108 = por %p106, %p107
    %p109 = scmp.ne.s32.totalorder %s100, %s101
    %p110 = scmp.eq.s32.totalorder %s17, 0
    %p111 = por %p109, %p110
    %p112 = scmp.ne.s32.totalorder %s100, %s101
    %p113 = scmp.eq.s32.totalorder %s18, 3
    %p114 = por %p112, %p113
    %p116 = scmp.ne.s32.totalorder %s101, %s115
    %p117 = scmp.eq.s32.totalorder %s18, 0
    %p118 = por %p116, %p117
    %s120 = sadd.s32 %s119, 1
    %p123 = scmp.eq.s32.totalorder %s12, 3
    %p124 = scmp.ne.s32.totalorder %s119, %s121
    %p125 = scmp.eq.s32.totalorder %s12, 0
    %p126 = por %p124, %p125
    %p127 = scmp.ne.s32.totalorder %s119, %s121
    %p128 = scmp.eq.s32.totalorder %s17, 3
    %p129 = por %p127, %p128
    %p130 = scmp.ne.s32.totalorder %s121, %s122
    %p131 = scmp.eq.s32.totalorder %s17, 0
    %p132 = por %p130, %p131
    %p133 = scmp.ne.s32.totalorder %s121, %s122
    %p134 = scmp.eq.s32.totalorder %s18, 3
    %p135 = por %p133, %p134
    %p137 = scmp.ne.s32.totalorder %s122, %s136
    %p138 = scmp.eq.s32.totalorder %s18, 0
    %p139 = por %p137, %p138
    %s141 = sadd.s32 %s140, 1
    %p144 = scmp.eq.s32.totalorder %s12, 3
    %p145 = scmp.ne.s32.totalorder %s140, %s142
    %p146 = scmp.eq.s32.totalorder %s12, 0
    %p147 = por %p145, %p146
    %p148 = scmp.ne.s32.totalorder %s140, %s142
    %p149 = scmp.eq.s32.totalorder %s17, 3
    %p150 = por %p148, %p149
    %p151 = scmp.ne.s32.totalorder %s142, %s143
    %p152 = scmp.eq.s32.totalorder %s17, 0
    %p153 = por %p151, %p152
    %p154 = scmp.ne.s32.totalorder %s142, %s143
    %p155 = scmp.eq.s32.totalorder %s18, 3
    %p156 = por %p154, %p155
    %p158 = scmp.ne.s32.totalorder %s143, %s157
    %p159 = scmp.eq.s32.totalorder %s18, 0
    %p160 = por %p158, %p159
    %s161 = ssub.s32 %s12, %s19
    %p162 = scmp.eq.s32.totalorder %s161, 0
    %s164 = sadd.s32 %s163, 1
    %s165 = scalar_select %p162, %s163, %s164
    %p168 = pneg %p162
    %p169 = scmp.eq.s32.totalorder %s12, 3
    %p170 = por %p168, %p169
    %p171 = scmp.ne.s32.totalorder %s163, %s166
    %p172 = scmp.eq.s32.totalorder %s12, 0
    %p173 = por %p171, %p172
    %p174 = scmp.ne.s32.totalorder %s163, %s166
    %p175 = scmp.eq.s32.totalorder %s17, 3
    %p176 = por %p174, %p175
    %p177 = scmp.ne.s32.totalorder %s166, %s167
    %p178 = scmp.eq.s32.totalorder %s17, 0
    %p179 = por %p177, %p178
    %p180 = scmp.ne.s32.totalorder %s166, %s167
    %p181 = scmp.eq.s32.totalorder %s18, 3
    %p182 = por %p180, %p181
    %p184 = scmp.ne.s32.totalorder %s167, %s183
    %p185 = scmp.eq.s32.totalorder %s18, 0
    %p186 = por %p184, %p185
    %p187 = scmp.le.s32.totalorder 1, %s12
    %p188 = scmp.lt.s32.totalorder %s12, 5
    %p189 = pnand %p187, %p188
    %p190 = pneg %p189
    // Predicated region
    $region9: #{tpu_custom_call.1} parent=5 // pred_check
      _
    $region10: #{tpu_custom_call.1} parent=5 // pred_check_branch
      %192 = sbr.rel (%p189) target = $region12
    $region11: #{tpu_custom_call.1} parent=5 // pred_region
      %s193 = ssub.s32 %s12, 1
      // Predicated region
      $region13: #{tpu_custom_call.1} parent=11 // pred_check
        %p194 = pneg %p111
      $region14: #{tpu_custom_call.1} parent=11 // pred_check_branch
        %196 = sbr.rel (%p194) target = $region16
      $region15: #{tpu_custom_call.1} parent=11 // pred_region
        _
      $region16: #{tpu_custom_call.1} parent=11 // pred_fallthru
        _
      // Predicated region
      $region17: #{tpu_custom_call.1} parent=11 // pred_check
        %p197 = pneg %p132
      $region18: #{tpu_custom_call.1} parent=11 // pred_check_branch
        %199 = sbr.rel (%p197) target = $region20
      $region19: #{tpu_custom_call.1} parent=11 // pred_region
        _
      $region20: #{tpu_custom_call.1} parent=11 // pred_fallthru
        _
      // Predicated region
      $region21: #{tpu_custom_call.1} parent=11 // pred_check
        %p200 = pneg %p153
      $region22: #{tpu_custom_call.1} parent=11 // pred_check_branch
        %202 = sbr.rel (%p200) target = $region24
      $region23: #{tpu_custom_call.1} parent=11 // pred_region
        _
      $region24: #{tpu_custom_call.1} parent=11 // pred_fallthru
        _
    $region12: #{tpu_custom_call.1} parent=5 // pred_fallthru
      _
    %p203 = scmp.lt.s32.totalorder %s12, 4
    // Predicated region
    $region25: #{tpu_custom_call.1} parent=5 // pred_check
      %p204 = pneg %p203
    $region26: #{tpu_custom_call.1} parent=5 // pred_check_branch
      %206 = sbr.rel (%p204) target = $region28
    $region27: #{tpu_custom_call.1} parent=5 // pred_region
      // Predicated region
      $region29: #{tpu_custom_call.1} parent=27 // pred_check
        %p207 = pneg %p32
      $region30: #{tpu_custom_call.1} parent=27 // pred_check_branch
        %209 = sbr.rel (%p207) target = $region32
      $region31: #{tpu_custom_call.1} parent=27 // pred_region
        %s210 = smul.u32 8, %s12
        %p211 = scmp.lt.s32.totalorder %s210, 31
        %s212 = scalar_select %p211, %s210, 31
        %s213 = smul.addr %s212, 8
        %s214 = scalar_lea.vmem %s0, %s213
        %s215 = smul.u32 8, %s12
      $region32: #{tpu_custom_call.1} parent=27 // pred_fallthru
        _
      // Predicated region
      $region33: #{tpu_custom_call.1} parent=27 // pred_check
        %p216 = pneg %p58
      $region34: #{tpu_custom_call.1} parent=27 // pred_check_branch
        %218 = sbr.rel (%p216) target = $region36
      $region35: #{tpu_custom_call.1} parent=27 // pred_region
        %s219 = smul.u32 8, %s12
        %p220 = scmp.lt.s32.totalorder %s219, 31
        %s221 = scalar_select %p220, %s219, 31
        %s222 = smul.addr %s221, 8
        %s223 = scalar_lea.vmem %s1, %s222
        %s224 = smul.u32 8, %s12
      $region36: #{tpu_custom_call.1} parent=27 // pred_fallthru
        _
      // Predicated region
      $region37: #{tpu_custom_call.1} parent=27 // pred_check
        %p225 = pneg %p84
      $region38: #{tpu_custom_call.1} parent=27 // pred_check_branch
        %227 = sbr.rel (%p225) target = $region40
      $region39: #{tpu_custom_call.1} parent=27 // pred_region
        %s228 = smul.u32 8, %s12
        %p229 = scmp.lt.s32.totalorder %s228, 31
        %s230 = scalar_select %p229, %s228, 31
        %s231 = smul.addr %s230, 8
        %s232 = scalar_lea.vmem %s2, %s231
        %s233 = smul.u32 8, %s12
      $region40: #{tpu_custom_call.1} parent=27 // pred_fallthru
        _
    $region28: #{tpu_custom_call.1} parent=5 // pred_fallthru
      _
    %p234 = scmp.le.s32.totalorder 1, %s12
    %p235 = scmp.lt.s32.totalorder %s12, 5
    %p236 = pnand %p234, %p235
    %p237 = pneg %p236
    // Predicated region
    $region41: #{tpu_custom_call.1} parent=5 // pred_check
      _
    $region42: #{tpu_custom_call.1} parent=5 // pred_check_branch
      %239 = sbr.rel (%p236) target = $region44
    $region43: #{tpu_custom_call.1} parent=5 // pred_region
      %s240 = ssub.s32 %s12, 1
      %s241 = smul.u32 8, %s17
      %p242 = scmp.lt.s32.totalorder %s241, 31
      %s243 = scalar_select %p242, %s241, 31
      %s244 = smul.addr %s243, 8
      %s245 = scalar_lea.vmem %s0, %s244
      %p246 = pneg %p38
      %p247 = pneg %p35
      %s248 = smul.u32 8, %s17
      %p249 = scmp.lt.s32.totalorder %s248, 31
      %s250 = scalar_select %p249, %s248, 31
      %s251 = smul.addr %s250, 8
      %s252 = scalar_lea.vmem %s1, %s251
      %p253 = pneg %p64
      %p254 = pneg %p61
      %s255 = smul.u32 8, %s17
      %p256 = scmp.lt.s32.totalorder %s255, 31
      %s257 = scalar_select %p256, %s255, 31
      %s258 = smul.addr %s257, 8
      %s259 = scalar_lea.vmem %s2, %s258
      %p260 = pneg %p90
      %p261 = pneg %p87
      %p262 = pneg %p111
      %p263 = pneg %p108
      %p264 = pneg %p132
      %p265 = pneg %p129
      %p266 = pneg %p153
      %p267 = pneg %p150
      %p268 = pneg %p179
      %p269 = pneg %p176
      %s270 = smul.u32 8, %s17
      %p271 = scmp.lt.s32.totalorder %s270, 31
      %s272 = scalar_select %p271, %s270, 31
      %s273 = smul.addr %s272, 8
      %s274 = scalar_lea.vmem %s6, %s273
      %s275 = smul.u32 8, %s17
      %p276 = scmp.lt.s32.totalorder %s275, 31
      %s277 = scalar_select %p276, %s275, 31
      %s278 = smul.addr %s277, 8
      %s279 = scalar_lea.vmem %s0, %s278
      %s280 = smul.u32 8, %s17
      %s281 = smul.u32 8, %s17
      %p282 = scmp.lt.s32.totalorder %s281, 31
      %s283 = scalar_select %p282, %s281, 31
      %s284 = smul.addr %s283, 8
      %s285 = scalar_lea.vmem %s1, %s284
      %s286 = smul.u32 8, %s17
      %s287 = smul.u32 8, %s17
      %p288 = scmp.lt.s32.totalorder %s287, 31
      %s289 = scalar_select %p288, %s287, 31
      %s290 = smul.addr %s289, 8
      %s291 = scalar_lea.vmem %s2, %s290
      %s292 = smul.u32 8, %s17
      %s293 = smul.u32 8, %s17
      %p294 = scmp.lt.s32.totalorder %s293, 31
      %s295 = scalar_select %p294, %s293, 31
      %s296 = smul.addr %s295, 8
      %s297 = scalar_lea.vmem %s6, %s296
      %s298 = smul.u32 8, %s17
      %v299 = vld [vmem:[%s279] sm:$0xff]
      %v300 = vld [vmem:[%s279 + $0x8] sm:$0xff]
      %v301 = vld [vmem:[%s279 + $0x10] sm:$0xff]
      %v302 = vld [vmem:[%s279 + $0x18] sm:$0xff]
      %v303 = vld [vmem:[%s279 + $0x20] sm:$0xff]
      %v304 = vld [vmem:[%s279 + $0x28] sm:$0xff]
      %v305 = vld [vmem:[%s279 + $0x30] sm:$0xff]
      %v306 = vld [vmem:[%s279 + $0x38] sm:$0xff]
      %v307 = vld [vmem:[%s3] sm:$0xff]
      %v308 = vld [vmem:[%s3 + $0x8] sm:$0xff]
      %v309 = vld [vmem:[%s3 + $0x10] sm:$0xff]
      %v310 = vld [vmem:[%s3 + $0x18] sm:$0xff]
      %v311 = vld [vmem:[%s285] sm:$0xff]
      %v312 = vld [vmem:[%s285 + $0x8] sm:$0xff]
      %v313 = vld [vmem:[%s285 + $0x10] sm:$0xff]
      %v314 = vld [vmem:[%s285 + $0x18] sm:$0xff]
      %v315 = vld [vmem:[%s285 + $0x20] sm:$0xff]
      %v316 = vld [vmem:[%s285 + $0x28] sm:$0xff]
      %v317 = vld [vmem:[%s285 + $0x30] sm:$0xff]
      %v318 = vld [vmem:[%s285 + $0x38] sm:$0xff]
      %v319 = vld [vmem:[%s4] sm:$0xff]
      %v320 = vld [vmem:[%s4 + $0x8] sm:$0xff]
      %v321 = vld [vmem:[%s4 + $0x10] sm:$0xff]
      %v322 = vld [vmem:[%s4 + $0x18] sm:$0xff]
      %vm323 = vcmask 261120
      %v325 = vsel %vm323, %v311, 0
      %v328 = vsel %vm323, %v312, 0
      %v331 = vsel %vm323, %v313, 0
      %v334 = vsel %vm323, %v314, 0
      %v337 = vsel %vm323, %v315, 0
      %v340 = vsel %vm323, %v316, 0
      %v343 = vsel %vm323, %v317, 0
      %v346 = vsel %vm323, %v318, 0
      %348 = vmatprep.subr.mxu0 0.0
      %349 = vmatpush1.msra.mxu0 %v319
      %350 = vmatprep.subr.mxu0 0.0
      %351 = vmatpush1.msra.mxu0 %v320
      %352 = vmatprep.subr.mxu0 0.0
      %353 = vmatpush1.msra.mxu0 %v321
      %354 = vmatprep.subr.mxu0 0.0
      %355 = vmatpush1.msra.mxu0 %v322
      %356 = vmatprep.subr.mxu0 0.0
      %357 = vmatpush1.msra.mxu0 0.0
      %358 = vmatprep.subr.mxu0 0.0
      %359 = vmatpush1.msra.mxu0 0.0
      %360 = vmatprep.subr.mxu0 0.0
      %361 = vmatpush1.msra.mxu0 0.0
      %362 = vmatprep.subr.mxu0 0.0
      %363 = vmatpush1.msra.mxu0 0.0
      %364 = vmatprep.subr.mxu0 0.0
      %365 = vmatpush1.msra.mxu0 0.0
      %366 = vmatprep.subr.mxu0 0.0
      %367 = vmatpush1.msra.mxu0 0.0
      %368 = vmatprep.subr.mxu0 0.0
      %369 = vmatpush1.msra.mxu0 0.0
      %370 = vmatprep.subr.mxu0 0.0
      %371 = vmatpush1.msra.mxu0 0.0
      %372 = vmatprep.subr.mxu0 0.0
      %373 = vmatpush1.msra.mxu0 0.0
      %374 = vmatprep.subr.mxu0 0.0
      %375 = vmatpush1.msra.mxu0 0.0
      %376 = vmatprep.subr.mxu0 0.0
      %377 = vmatpush1.msra.mxu0 0.0
      %378 = vmatprep.subr.mxu0 0.0
      %379 = vmatpush1.msra.mxu0 0.0
      %380 = vmatprep.subr.mxu0 0.0
      %381 = vmatpush1.msra.mxu0 0.0
      %382 = vmatprep.subr.mxu0 0.0
      %383 = vmatpush1.msra.mxu0 0.0
      %384 = vmatprep.subr.mxu0 0.0
      %385 = vmatpush1.msra.mxu0 0.0
      %386 = vmatprep.subr.mxu0 0.0
      %387 = vmatpush1.msra.mxu0 0.0
      %388 = vmatprep.subr.mxu0 0.0
      %389 = vmatpush1.msra.mxu0 0.0
      %390 = vmatprep.subr.mxu0 0.0
      %391 = vmatpush1.msra.mxu0 0.0
      %392 = vmatprep.subr.mxu0 0.0
      %393 = vmatpush1.msra.mxu0 0.0
      %394 = vmatprep.subr.mxu0 0.0
      %395 = vmatpush1.msra.mxu0 0.0
      %396 = vmatprep.subr.mxu0 0.0
      %397 = vmatpush1.msra.mxu0 0.0
      %398 = vmatprep.subr.mxu0 0.0
      %399 = vmatpush1.msra.mxu0 0.0
      %400 = vmatprep.subr.mxu0 0.0
      %401 = vmatpush1.msra.mxu0 0.0
      %402 = vmatprep.subr.mxu0 0.0
      %403 = vmatpush1.msra.mxu0 0.0
      %404 = vmatprep.subr.mxu0 0.0
      %405 = vmatpush1.msra.mxu0 0.0
      %406 = vmatprep.subr.mxu0 0.0
      %407 = vmatpush1.msra.mxu0 0.0
      %408 = vmatprep.subr.mxu0 0.0
      %409 = vmatpush1.msra.mxu0 0.0
      %410 = vmatprep.subr.mxu0 0.0
      %411 = vmatpush1.msra.mxu0 0.0
      %412 = vmatprep.mubr.f32.mxu0 0.0
      %413 = vmatmul.mubr.f32.gmra.mrb[0].mxu0 %v325
      %v414 = vpop.f32.mrb[0].mxu0
      %v415 = vadd.f32 0.0, %v414
      %v416 = vpop.f32.mrb[0].mxu0
      %417 = vmatprep.mubr.f32.mxu0 0.0
      %418 = vmatmul.mubr.f32.gmra.mrb[0].mxu0 %v328
      %v419 = vpop.f32.mrb[0].mxu0
      %v420 = vadd.f32 0.0, %v419
      %v421 = vpop.f32.mrb[0].mxu0
      %422 = vmatprep.mubr.f32.mxu0 0.0
      %423 = vmatmul.mubr.f32.gmra.mrb[0].mxu0 %v331
      %v424 = vpop.f32.mrb[0].mxu0
      %v425 = vadd.f32 0.0, %v424
      %v426 = vpop.f32.mrb[0].mxu0
      %427 = vmatprep.mubr.f32.mxu0 0.0
      %428 = vmatmul.mubr.f32.gmra.mrb[0].mxu0 %v334
      %v429 = vpop.f32.mrb[0].mxu0
      %v430 = vadd.f32 0.0, %v429
      %v431 = vpop.f32.mrb[0].mxu0
      %432 = vmatprep.mubr.f32.mxu0 0.0
      %433 = vmatmul.mubr.f32.gmra.mrb[0].mxu0 %v337
      %v434 = vpop.f32.mrb[0].mxu0
      %v435 = vadd.f32 0.0, %v434
      %v436 = vpop.f32.mrb[0].mxu0
      %437 = vmatprep.mubr.f32.mxu0 0.0
      %438 = vmatmul.mubr.f32.gmra.mrb[0].mxu0 %v340
      %v439 = vpop.f32.mrb[0].mxu0
      %v440 = vadd.f32 0.0, %v439
      %v441 = vpop.f32.mrb[0].mxu0
      %442 = vmatprep.mubr.f32.mxu0 0.0
      %443 = vmatmul.mubr.f32.gmra.mrb[0].mxu0 %v343
      %v444 = vpop.f32.mrb[0].mxu0
      %v445 = vadd.f32 0.0, %v444
      %v446 = vpop.f32.mrb[0].mxu0
      %447 = vmatprep.mubr.f32.mxu0 0.0
      %448 = vmatmul.mubr.f32.gmra.mrb[0].mxu0 %v346
      %v449 = vpop.f32.mrb[0].mxu0
      %v450 = vadd.f32 0.0, %v449
      %v451 = vpop.f32.mrb[0].mxu0
      %452 = vdwg.mxu0
      %v454 = vsel %vm323, %v299, 0
      %v457 = vsel %vm323, %v300, 0
      %v460 = vsel %vm323, %v301, 0
      %v463 = vsel %vm323, %v302, 0
      %v466 = vsel %vm323, %v303, 0
      %v469 = vsel %vm323, %v304, 0
      %v472 = vsel %vm323, %v305, 0
      %v475 = vsel %vm323, %v306, 0
      %477 = vmatprep.subr.mxu0 0.0
      %478 = vmatpush1.msra.mxu0 %v307
      %479 = vmatprep.subr.mxu0 0.0
      %480 = vmatpush1.msra.mxu0 %v308
      %481 = vmatprep.subr.mxu0 0.0
      %482 = vmatpush1.msra.mxu0 %v309
      %483 = vmatprep.subr.mxu0 0.0
      %484 = vmatpush1.msra.mxu0 %v310
      %485 = vmatprep.subr.mxu0 0.0
      %486 = vmatpush1.msra.mxu0 0.0
      %487 = vmatprep.subr.mxu0 0.0
      %488 = vmatpush1.msra.mxu0 0.0
      %489 = vmatprep.subr.mxu0 0.0
      %490 = vmatpush1.msra.mxu0 0.0
      %491 = vmatprep.subr.mxu0 0.0
      %492 = vmatpush1.msra.mxu0 0.0
      %493 = vmatprep.subr.mxu0 0.0
      %494 = vmatpush1.msra.mxu0 0.0
      %495 = vmatprep.subr.mxu0 0.0
      %496 = vmatpush1.msra.mxu0 0.0
      %497 = vmatprep.subr.mxu0 0.0
      %498 = vmatpush1.msra.mxu0 0.0
      %499 = vmatprep.subr.mxu0 0.0
      %500 = vmatpush1.msra.mxu0 0.0
      %501 = vmatprep.subr.mxu0 0.0
      %502 = vmatpush1.msra.mxu0 0.0
      %503 = vmatprep.subr.mxu0 0.0
      %504 = vmatpush1.msra.mxu0 0.0
      %505 = vmatprep.subr.mxu0 0.0
      %506 = vmatpush1.msra.mxu0 0.0
      %507 = vmatprep.subr.mxu0 0.0
      %508 = vmatpush1.msra.mxu0 0.0
      %509 = vmatprep.subr.mxu0 0.0
      %510 = vmatpush1.msra.mxu0 0.0
      %511 = vmatprep.subr.mxu0 0.0
      %512 = vmatpush1.msra.mxu0 0.0
      %513 = vmatprep.subr.mxu0 0.0
      %514 = vmatpush1.msra.mxu0 0.0
      %515 = vmatprep.subr.mxu0 0.0
      %516 = vmatpush1.msra.mxu0 0.0
      %517 = vmatprep.subr.mxu0 0.0
      %518 = vmatpush1.msra.mxu0 0.0
      %519 = vmatprep.subr.mxu0 0.0
      %520 = vmatpush1.msra.mxu0 0.0
      %521 = vmatprep.subr.mxu0 0.0
      %522 = vmatpush1.msra.mxu0 0.0
      %523 = vmatprep.subr.mxu0 0.0
      %524 = vmatpush1.msra.mxu0 0.0
      %525 = vmatprep.subr.mxu0 0.0
      %526 = vmatpush1.msra.mxu0 0.0
      %527 = vmatprep.subr.mxu0 0.0
      %528 = vmatpush1.msra.mxu0 0.0
      %529 = vmatprep.subr.mxu0 0.0
      %530 = vmatpush1.msra.mxu0 0.0
      %531 = vmatprep.subr.mxu0 0.0
      %532 = vmatpush1.msra.mxu0 0.0
      %533 = vmatprep.subr.mxu0 0.0
      %534 = vmatpush1.msra.mxu0 0.0
      %535 = vmatprep.subr.mxu0 0.0
      %536 = vmatpush1.msra.mxu0 0.0
      %537 = vmatprep.subr.mxu0 0.0
      %538 = vmatpush1.msra.mxu0 0.0
      %539 = vmatprep.subr.mxu0 0.0
      %540 = vmatpush1.msra.mxu0 0.0
      %541 = vmatprep.mubr.f32.mxu0 0.0
      %542 = vmatmul.mubr.f32.gmra.mrb[0].mxu0 %v454
      %v543 = vpop.f32.mrb[0].mxu0
      %v544 = vadd.f32 %v415, %v543
      %v545 = vpop.f32.mrb[0].mxu0
      %546 = vmatprep.mubr.f32.mxu0 0.0
      %547 = vmatmul.mubr.f32.gmra.mrb[0].mxu0 %v457
      %v548 = vpop.f32.mrb[0].mxu0
      %v549 = vadd.f32 %v420, %v548
      %v550 = vpop.f32.mrb[0].mxu0
      %551 = vmatprep.mubr.f32.mxu0 0.0
      %552 = vmatmul.mubr.f32.gmra.mrb[0].mxu0 %v460
      %v553 = vpop.f32.mrb[0].mxu0
      %v554 = vadd.f32 %v425, %v553
      %v555 = vpop.f32.mrb[0].mxu0
      %556 = vmatprep.mubr.f32.mxu0 0.0
      %557 = vmatmul.mubr.f32.gmra.mrb[0].mxu0 %v463
      %v558 = vpop.f32.mrb[0].mxu0
      %v559 = vadd.f32 %v430, %v558
      %v560 = vpop.f32.mrb[0].mxu0
      %561 = vmatprep.mubr.f32.mxu0 0.0
      %562 = vmatmul.mubr.f32.gmra.mrb[0].mxu0 %v466
      %v563 = vpop.f32.mrb[0].mxu0
      %v564 = vadd.f32 %v435, %v563
      %v565 = vpop.f32.mrb[0].mxu0
      %566 = vmatprep.mubr.f32.mxu0 0.0
      %567 = vmatmul.mubr.f32.gmra.mrb[0].mxu0 %v469
      %v568 = vpop.f32.mrb[0].mxu0
      %v569 = vadd.f32 %v440, %v568
      %v570 = vpop.f32.mrb[0].mxu0
      %571 = vmatprep.mubr.f32.mxu0 0.0
      %572 = vmatmul.mubr.f32.gmra.mrb[0].mxu0 %v472
      %v573 = vpop.f32.mrb[0].mxu0
      %v574 = vadd.f32 %v445, %v573
      %v575 = vpop.f32.mrb[0].mxu0
      %576 = vmatprep.mubr.f32.mxu0 0.0
      %577 = vmatmul.mubr.f32.gmra.mrb[0].mxu0 %v475
      %v578 = vpop.f32.mrb[0].mxu0
      %v579 = vadd.f32 %v450, %v578
      %v580 = vpop.f32.mrb[0].mxu0
      %581 = vdwg.mxu0
      %v582 = vld [vmem:[%s291] sm:$0xff]
      %v583 = vld [vmem:[%s291 + $0x8] sm:$0xff]
      %v584 = vld [vmem:[%s291 + $0x10] sm:$0xff]
      %v585 = vld [vmem:[%s291 + $0x18] sm:$0xff]
      %v586 = vld [vmem:[%s291 + $0x20] sm:$0xff]
      %v587 = vld [vmem:[%s291 + $0x28] sm:$0xff]
      %v588 = vld [vmem:[%s291 + $0x30] sm:$0xff]
      %v589 = vld [vmem:[%s291 + $0x38] sm:$0xff]
      %v591 = vsel %vm323, %v582, 0
      %v594 = vsel %vm323, %v583, 0
      %v597 = vsel %vm323, %v584, 0
      %v600 = vsel %vm323, %v585, 0
      %v603 = vsel %vm323, %v586, 0
      %v606 = vsel %vm323, %v587, 0
      %v609 = vsel %vm323, %v588, 0
      %v612 = vsel %vm323, %v589, 0
      %614 = vmatprep.subr.mxu0 0.0
      %615 = vmatpush1.msra.mxu0 %v319
      %616 = vmatprep.subr.mxu0 0.0
      %617 = vmatpush1.msra.mxu0 %v320
      %618 = vmatprep.subr.mxu0 0.0
      %619 = vmatpush1.msra.mxu0 %v321
      %620 = vmatprep.subr.mxu0 0.0
      %621 = vmatpush1.msra.mxu0 %v322
      %622 = vmatprep.subr.mxu0 0.0
      %623 = vmatpush1.msra.mxu0 0.0
      %624 = vmatprep.subr.mxu0 0.0
      %625 = vmatpush1.msra.mxu0 0.0
      %626 = vmatprep.subr.mxu0 0.0
      %627 = vmatpush1.msra.mxu0 0.0
      %628 = vmatprep.subr.mxu0 0.0
      %629 = vmatpush1.msra.mxu0 0.0
      %630 = vmatprep.subr.mxu0 0.0
      %631 = vmatpush1.msra.mxu0 0.0
      %632 = vmatprep.subr.mxu0 0.0
      %633 = vmatpush1.msra.mxu0 0.0
      %634 = vmatprep.subr.mxu0 0.0
      %635 = vmatpush1.msra.mxu0 0.0
      %636 = vmatprep.subr.mxu0 0.0
      %637 = vmatpush1.msra.mxu0 0.0
      %638 = vmatprep.subr.mxu0 0.0
      %639 = vmatpush1.msra.mxu0 0.0
      %640 = vmatprep.subr.mxu0 0.0
      %641 = vmatpush1.msra.mxu0 0.0
      %642 = vmatprep.subr.mxu0 0.0
      %643 = vmatpush1.msra.mxu0 0.0
      %644 = vmatprep.subr.mxu0 0.0
      %645 = vmatpush1.msra.mxu0 0.0
      %646 = vmatprep.subr.mxu0 0.0
      %647 = vmatpush1.msra.mxu0 0.0
      %648 = vmatprep.subr.mxu0 0.0
      %649 = vmatpush1.msra.mxu0 0.0
      %650 = vmatprep.subr.mxu0 0.0
      %651 = vmatpush1.msra.mxu0 0.0
      %652 = vmatprep.subr.mxu0 0.0
      %653 = vmatpush1.msra.mxu0 0.0
      %654 = vmatprep.subr.mxu0 0.0
      %655 = vmatpush1.msra.mxu0 0.0
      %656 = vmatprep.subr.mxu0 0.0
      %657 = vmatpush1.msra.mxu0 0.0
      %658 = vmatprep.subr.mxu0 0.0
      %659 = vmatpush1.msra.mxu0 0.0
      %660 = vmatprep.subr.mxu0 0.0
      %661 = vmatpush1.msra.mxu0 0.0
      %662 = vmatprep.subr.mxu0 0.0
      %663 = vmatpush1.msra.mxu0 0.0
      %664 = vmatprep.subr.mxu0 0.0
      %665 = vmatpush1.msra.mxu0 0.0
      %666 = vmatprep.subr.mxu0 0.0
      %667 = vmatpush1.msra.mxu0 0.0
      %668 = vmatprep.subr.mxu0 0.0
      %669 = vmatpush1.msra.mxu0 0.0
      %670 = vmatprep.subr.mxu0 0.0
      %671 = vmatpush1.msra.mxu0 0.0
      %672 = vmatprep.subr.mxu0 0.0
      %673 = vmatpush1.msra.mxu0 0.0
      %674 = vmatprep.subr.mxu0 0.0
      %675 = vmatpush1.msra.mxu0 0.0
      %676 = vmatprep.subr.mxu0 0.0
      %677 = vmatpush1.msra.mxu0 0.0
      %678 = vmatprep.mubr.f32.mxu0 0.0
      %679 = vmatmul.mubr.f32.gmra.mrb[0].mxu0 %v591
      %v680 = vpop.f32.mrb[0].mxu0
      %v681 = vadd.f32 0.0, %v680
      %v682 = vpop.f32.mrb[0].mxu0
      %683 = vmatprep.mubr.f32.mxu0 0.0
      %684 = vmatmul.mubr.f32.gmra.mrb[0].mxu0 %v594
      %v685 = vpop.f32.mrb[0].mxu0
      %v686 = vadd.f32 0.0, %v685
      %v687 = vpop.f32.mrb[0].mxu0
      %688 = vmatprep.mubr.f32.mxu0 0.0
      %689 = vmatmul.mubr.f32.gmra.mrb[0].mxu0 %v597
      %v690 = vpop.f32.mrb[0].mxu0
      %v691 = vadd.f32 0.0, %v690
      %v692 = vpop.f32.mrb[0].mxu0
      %693 = vmatprep.mubr.f32.mxu0 0.0
      %694 = vmatmul.mubr.f32.gmra.mrb[0].mxu0 %v600
      %v695 = vpop.f32.mrb[0].mxu0
      %v696 = vadd.f32 0.0, %v695
      %v697 = vpop.f32.mrb[0].mxu0
      %698 = vmatprep.mubr.f32.mxu0 0.0
      %699 = vmatmul.mubr.f32.gmra.mrb[0].mxu0 %v603
      %v700 = vpop.f32.mrb[0].mxu0
      %v701 = vadd.f32 0.0, %v700
      %v702 = vpop.f32.mrb[0].mxu0
      %703 = vmatprep.mubr.f32.mxu0 0.0
      %704 = vmatmul.mubr.f32.gmra.mrb[0].mxu0 %v606
      %v705 = vpop.f32.mrb[0].mxu0
      %v706 = vadd.f32 0.0, %v705
      %v707 = vpop.f32.mrb[0].mxu0
      %708 = vmatprep.mubr.f32.mxu0 0.0
      %709 = vmatmul.mubr.f32.gmra.mrb[0].mxu0 %v609
      %v710 = vpop.f32.mrb[0].mxu0
      %v711 = vadd.f32 0.0, %v710
      %v712 = vpop.f32.mrb[0].mxu0
      %713 = vmatprep.mubr.f32.mxu0 0.0
      %714 = vmatmul.mubr.f32.gmra.mrb[0].mxu0 %v612
      %v715 = vpop.f32.mrb[0].mxu0
      %v716 = vadd.f32 0.0, %v715
      %v717 = vpop.f32.mrb[0].mxu0
      %718 = vdwg.mxu0
      %v719 = vadd.f32 %v544, %v681
      %v720 = vadd.f32 %v549, %v686
      %v721 = vadd.f32 %v554, %v691
      %v722 = vadd.f32 %v559, %v696
      %v723 = vadd.f32 %v564, %v701
      %v724 = vadd.f32 %v569, %v706
      %v725 = vadd.f32 %v574, %v711
      %v726 = vadd.f32 %v579, %v716
      %v727 = vld [vmem:[%s5] sm:$0x1]
      %v729 = vlaneseq
      %v730 = vshrl.u32 %v729, 7
      %v731 = vsub.s32 0, %v730
      %v732 = vrot.slane %v727, %v731
      %v734 = vadd.f32 %v719, %v732
      %v735 = vadd.f32 %v720, %v732
      %v736 = vadd.f32 %v721, %v732
      %v737 = vadd.f32 %v722, %v732
      %v738 = vadd.f32 %v723, %v732
      %v739 = vadd.f32 %v724, %v732
      %v740 = vadd.f32 %v725, %v732
      %v741 = vadd.f32 %v726, %v732
      %vm742 = vcmask 130048
      %v743 = vsel %vm742, %v734, -inf
      %744 = vmax.xlane.f32.xlu0 %v743
      %v745 = vpop.xlane.xlu0 %744
      %v746 = vsel %vm742, %v735, -inf
      %747 = vmax.xlane.f32.xlu0 %v746
      %v748 = vpop.xlane.xlu0 %747
      %v749 = vsel %vm742, %v736, -inf
      %750 = vmax.xlane.f32.xlu0 %v749
      %v751 = vpop.xlane.xlu0 %750
      %v752 = vsel %vm742, %v737, -inf
      %753 = vmax.xlane.f32.xlu0 %v752
      %v754 = vpop.xlane.xlu0 %753
      %v755 = vsel %vm742, %v738, -inf
      %756 = vmax.xlane.f32.xlu0 %v755
      %v757 = vpop.xlane.xlu0 %756
      %v758 = vsel %vm742, %v739, -inf
      %759 = vmax.xlane.f32.xlu0 %v758
      %v760 = vpop.xlane.xlu0 %759
      %v761 = vsel %vm742, %v740, -inf
      %762 = vmax.xlane.f32.xlu0 %v761
      %v763 = vpop.xlane.xlu0 %762
      %v764 = vsel %vm742, %v741, -inf
      %765 = vmax.xlane.f32.xlu0 %v764
      %v766 = vpop.xlane.xlu0 %765
      %v767 = vsub.f32 %v734, %v745
      %v768 = vsub.f32 %v735, %v748
      %v769 = vsub.f32 %v736, %v751
      %v770 = vsub.f32 %v737, %v754
      %v771 = vsub.f32 %v738, %v757
      %v772 = vsub.f32 %v739, %v760
      %v773 = vsub.f32 %v740, %v763
      %v774 = vsub.f32 %v741, %v766
      %v775 = vmul.f32 %v767, 1.442695
      %v776 = vpow.pop %v775
      %v777 = vmul.f32 %v768, 1.442695
      %v778 = vpow.pop %v777
      %v779 = vmul.f32 %v769, 1.442695
      %v780 = vpow.pop %v779
      %v781 = vmul.f32 %v770, 1.442695
      %v782 = vpow.pop %v781
      %v783 = vmul.f32 %v771, 1.442695
      %v784 = vpow.pop %v783
      %v785 = vmul.f32 %v772, 1.442695
      %v786 = vpow.pop %v785
      %v787 = vmul.f32 %v773, 1.442695
      %v788 = vpow.pop %v787
      %v789 = vmul.f32 %v774, 1.442695
      %v790 = vpow.pop %v789
      %v791 = vsel %vm742, %v776, 0.0
      %792 = vadd.xlane.f32.xlu0 %v791
      %v793 = vpop.xlane.xlu0 %792
      %v794 = vsel %vm742, %v778, 0.0
      %795 = vadd.xlane.f32.xlu0 %v794
      %v796 = vpop.xlane.xlu0 %795
      %v797 = vsel %vm742, %v780, 0.0
      %798 = vadd.xlane.f32.xlu0 %v797
      %v799 = vpop.xlane.xlu0 %798
      %v800 = vsel %vm742, %v782, 0.0
      %801 = vadd.xlane.f32.xlu0 %v800
      %v802 = vpop.xlane.xlu0 %801
      %v803 = vsel %vm742, %v784, 0.0
      %804 = vadd.xlane.f32.xlu0 %v803
      %v805 = vpop.xlane.xlu0 %804
      %v806 = vsel %vm742, %v786, 0.0
      %807 = vadd.xlane.f32.xlu0 %v806
      %v808 = vpop.xlane.xlu0 %807
      %v809 = vsel %vm742, %v788, 0.0
      %810 = vadd.xlane.f32.xlu0 %v809
      %v811 = vpop.xlane.xlu0 %810
      %v812 = vsel %vm742, %v790, 0.0
      %813 = vadd.xlane.f32.xlu0 %v812
      %v814 = vpop.xlane.xlu0 %813
      %v815 = vrcp.pop %v793
      %v816 = vrcp.pop %v796
      %v817 = vrcp.pop %v799
      %v818 = vrcp.pop %v802
      %v819 = vrcp.pop %v805
      %v820 = vrcp.pop %v808
      %v821 = vrcp.pop %v811
      %v822 = vrcp.pop %v814
      %v823 = vmul.f32 %v776, %v815
      %v824 = vmul.f32 %v778, %v816
      %v825 = vmul.f32 %v780, %v817
      %v826 = vmul.f32 %v782, %v818
      %v827 = vmul.f32 %v784, %v819
      %v828 = vmul.f32 %v786, %v820
      %v829 = vmul.f32 %v788, %v821
      %v830 = vmul.f32 %v790, %v822
      %831 = vst.msk [vmem:[%s297] sm:$0xff] %vm742, %v823
      %832 = vst.msk [vmem:[%s297 + $0x8] sm:$0xff] %vm742, %v824
      %833 = vst.msk [vmem:[%s297 + $0x10] sm:$0xff] %vm742, %v825
      %834 = vst.msk [vmem:[%s297 + $0x18] sm:$0xff] %vm742, %v826
      %835 = vst.msk [vmem:[%s297 + $0x20] sm:$0xff] %vm742, %v827
      %836 = vst.msk [vmem:[%s297 + $0x28] sm:$0xff] %vm742, %v828
      %837 = vst.msk [vmem:[%s297 + $0x30] sm:$0xff] %vm742, %v829
      %838 = vst.msk [vmem:[%s297 + $0x38] sm:$0xff] %vm742, %v830
      %s839 = smul.u32 8, %s17
      %p840 = scmp.lt.s32.totalorder %s839, 31
      %s841 = scalar_select %p840, %s839, 31
      %s842 = smul.addr %s841, 8
      %s843 = scalar_lea.vmem %s6, %s842
      // Predicated region
      $region45: #{tpu_custom_call.1} parent=43 // pred_check
        %p844 = pneg %p176
      $region46: #{tpu_custom_call.1} parent=43 // pred_check_branch
        %846 = sbr.rel (%p844) target = $region48
      $region47: #{tpu_custom_call.1} parent=43 // pred_region
        %s847 = smul.u32 8, %s17
      $region48: #{tpu_custom_call.1} parent=43 // pred_fallthru
        _
    $region44: #{tpu_custom_call.1} parent=5 // pred_fallthru
      _
    %p848 = scmp.le.s32.totalorder 2, %s12
    // Predicated region
    $region49: #{tpu_custom_call.1} parent=5 // pred_check
      %p849 = pneg %p848
    $region50: #{tpu_custom_call.1} parent=5 // pred_check_branch
      %851 = sbr.rel (%p849) target = $region52
    $region51: #{tpu_custom_call.1} parent=5 // pred_region
      %s852 = ssub.s32 %s12, 2
      // Predicated region
      $region53: #{tpu_custom_call.1} parent=51 // pred_check
        %p853 = pneg %p182
      $region54: #{tpu_custom_call.1} parent=51 // pred_check_branch
        %855 = sbr.rel (%p853) target = $region56
      $region55: #{tpu_custom_call.1} parent=51 // pred_region
        %s856 = smul.u32 8, %s18
        %p857 = scmp.lt.s32.totalorder %s856, 31
        %s858 = scalar_select %p857, %s856, 31
        %s859 = smul.addr %s858, 8
        %s860 = scalar_lea.vmem %s6, %s859
      $region56: #{tpu_custom_call.1} parent=51 // pred_fallthru
        _
    $region52: #{tpu_custom_call.1} parent=5 // pred_fallthru
      _
  $region6: #{tpu_custom_call.1} parent=0 // loop_footer
    %s16 = sadd.s32 1, %s12
  $region7: #{tpu_custom_call.1} parent=0 // loop_footer_branch
    %11 = sbr.rel target = $region3
  $region8: #{tpu_custom_call.1} parent=0 // loop_exit
    _

</llo_original>
